<compile_context>
chip_gen: v7x
topology: tpu7x:2x2x1
jax: 0.10.0
libtpu: 0.0.40
codegen_flags: <defaults>
</compile_context>

<pallas_src>
import jax
import jax.numpy as jnp
from jax.experimental import pallas as pl
from jax.experimental.pallas import tpu as pltpu


def _mono_kernel(a_ref, d_ref, o_ref):
    """out[p, c] = exp(-d[p] * a[c]) for one sublane tile of p."""
    d = d_ref[...]                    # (tp, 1)  sublane column
    a = a_ref[...]                    # (1, C)   lane row
    o_ref[...] = jnp.exp(-(d * a))    # (tp, C)  VPU mul + EUP exp


def _round_up(x, m):
    return ((x + m - 1) // m) * m


def _pick_tile_rows(np2, c, target_block_bytes=2 << 20, min_steps=8):
    """Rows per tile: ~target_block_bytes per output block, >= min_steps steps."""
    if np2 <= 8:
        return np2                             # tiny: single full-extent block
    bytes_per_row = 4 * c
    tp = max(8, (target_block_bytes // bytes_per_row) // 8 * 8)
    # Prefer >= min_steps grid steps (>= 3-4 per v7x TensorCore) for pipelining.
    tp = min(tp, max(8, _round_up(pl.cdiv(np2, min_steps), 8)))
    tp = min(tp, _round_up(np2, 8))
    return int(tp)


def monotonically_decreasing_individual(distance_matrix, a, embed_dim,
                                        num_heads, target_block_bytes=2 << 20):
    """Pallas forward matching MonotonicallyDecreasingFunctionIndividual."""
    num_patches = distance_matrix.shape[0]
    np2 = num_patches * num_patches
    c = embed_dim * num_heads

    d_col = distance_matrix.reshape(np2, 1).astype(jnp.float32)   # (np2, 1)
    a_row = a.reshape(1, c).astype(jnp.float32)                   # (1, C)

    tp = _pick_tile_rows(np2, c, target_block_bytes)
    grid = (pl.cdiv(np2, tp),)        # partial last block handled by Pallas

    # Double-buffered output tile + small d/a tiles, generous headroom,
    # floored at the 32 MiB scoped default, capped at v7x's 64 MiB physical.
    bytes_needed = 4 * (2 * tp * c + 2 * tp + 2 * c)
    vmem_limit = int(min(64 * 1024 * 1024,
                         max(32 * 1024 * 1024, 4 * bytes_needed)))

    cost = pl.CostEstimate(
        flops=2 * np2 * c,
        transcendentals=np2 * c,
        bytes_accessed=4 * (np2 * c + np2 + c))

    out2d = pl.pallas_call(
        _mono_kernel,
        out_shape=jax.ShapeDtypeStruct((np2, c), jnp.float32),
        grid_spec=pltpu.PrefetchScalarGridSpec(
            num_scalar_prefetch=0,
            grid=grid,
            in_specs=[
                pl.BlockSpec((1, c), lambda i: (0, 0)),    # parameters a
                pl.BlockSpec((tp, 1), lambda i: (i, 0)),   # row tile of d
            ],
            out_specs=pl.BlockSpec((tp, c), lambda i: (i, 0)),
        ),
        compiler_params=pltpu.CompilerParams(
            dimension_semantics=("parallel",),
            vmem_limit_bytes=vmem_limit),
        cost_estimate=cost,
    )(a_row, d_col)

    # Row-major reshape of the contiguous (np2, C) slab matches torch's
    # .view(num_heads, N, N, embed_dim) on the contiguous (N*N, 1, C) tensor.
    return out2d.reshape(num_heads, num_patches, num_patches, embed_dim)


def _reference(distance_matrix, a, embed_dim, num_heads):
    num_patches = distance_matrix.shape[0]
    d = distance_matrix.reshape(-1, 1).astype(jnp.float32)        # (np2, 1)
    emb = jnp.exp(-(d * a.astype(jnp.float32).reshape(1, -1)))    # (np2, C)
    return emb.reshape(num_heads, num_patches, num_patches, embed_dim)


if __name__ == "__main__":
    # Small shapes consistent with the module's forward.
    embed_dim = 8
    num_heads = 4
    num_patches = 16    # np2 = 256 -> 8 grid steps of 32 rows each

    key = jax.random.PRNGKey(0)
    k_d, k_a = jax.random.split(key, 2)

    # Parameter a ~ torch.randn(embed_dim * num_heads)
    a = jax.random.normal(k_a, (embed_dim * num_heads,), dtype=jnp.float32)

    # Example distance matrix (non-negative, like real pairwise distances).
    distance_matrix = jnp.abs(
        jax.random.normal(k_d, (num_patches, num_patches), dtype=jnp.float32))

    out = monotonically_decreasing_individual(
        distance_matrix, a, embed_dim, num_heads)
    out = jax.block_until_ready(out)

    ref = _reference(distance_matrix, a, embed_dim, num_heads)

    assert out.shape == (num_heads, num_patches, num_patches, embed_dim)
    assert jnp.allclose(out, ref, atol=1e-5, rtol=1e-4)
    print("KERNEL_OK")
</pallas_src>

<mosaic_0001>
module attributes {stable_mosaic.version = 11 : i64} {
  func.func @_mono_kernel(%arg0: i32, %arg1: memref<1x32xf32, #tpu.memory_space<vmem>>, %arg2: memref<32x1xf32, #tpu.memory_space<vmem>>, %arg3: memref<32x32xf32, #tpu.memory_space<vmem>>) attributes {dimension_semantics = [#tpu.dimension_semantics<parallel>], iteration_bounds = array<i64: 8>, scalar_prefetch = 0 : i64, scratch_operands = 0 : i64, tpu.core_type = #tpu.core_type<tc>, window_params = [{pipeline_mode = #tpu.pipeline_mode<synchronous>, transform_indices = @transform_0, window_bounds = array<i64: 1, 32>}, {transform_indices = @transform_1, window_bounds = array<i64: 32, 1>}, {transform_indices = @transform_2, window_bounds = array<i64: 32, 32>}]} {
    %c0 = arith.constant 0 : index
    %c0_0 = arith.constant 0 : index
    %0 = vector.load %arg2[%c0, %c0_0] : memref<32x1xf32, #tpu.memory_space<vmem>>, vector<32x1xf32>
    %c0_1 = arith.constant 0 : index
    %c0_2 = arith.constant 0 : index
    %1 = vector.load %arg1[%c0_1, %c0_2] : memref<1x32xf32, #tpu.memory_space<vmem>>, vector<1x32xf32>
    %2 = vector.broadcast %0 : vector<32x1xf32> to vector<32x32xf32>
    %3 = vector.broadcast %1 : vector<1x32xf32> to vector<32x32xf32>
    %4 = arith.mulf %2, %3 : vector<32x32xf32>
    %cst = arith.constant 0.000000e+00 : f32
    %5 = vector.broadcast %cst : f32 to vector<32x32xf32>
    %6 = arith.subf %5, %4 : vector<32x32xf32>
    %7 = math.exp %6 : vector<32x32xf32>
    %c0_3 = arith.constant 0 : index
    %c0_4 = arith.constant 0 : index
    %8 = vector.load %arg3[%c0_3, %c0_4] : memref<32x32xf32, #tpu.memory_space<vmem>>, vector<32x32xf32>
    tpu.vector_store %arg3[%c0_3, %c0_4], %7 {strides = array<i32>} : memref<32x32xf32, #tpu.memory_space<vmem>>, vector<32x32xf32>,
    return
  }
  func.func @transform_0(%arg0: i32) -> (i32, i32) {
    %c0_i32 = arith.constant 0 : i32
    %c0_i32_0 = arith.constant 0 : i32
    %c0_i32_1 = arith.constant 0 : i32
    return %c0_i32, %c0_i32_0 : i32, i32
  }
  func.func @transform_1(%arg0: i32) -> (i32, i32) {
    %c0_i32 = arith.constant 0 : i32
    %c0_i32_0 = arith.constant 0 : i32
    return %arg0, %c0_i32 : i32, i32
  }
  func.func @transform_2(%arg0: i32) -> (i32, i32) {
    %c0_i32 = arith.constant 0 : i32
    %c0_i32_0 = arith.constant 0 : i32
    return %arg0, %c0_i32 : i32, i32
  }
}

</mosaic_0001>

<llo_original>
// kernel: tpu_custom_call.1
$region0: #{tpu_custom_call.1}
  #allocation0 [shape = 'u32[]', space=smem, size = 0x4, offset = 0x4, fixed_abs, tag = 'smem constant byte address 0x4 - core index']
  #allocation1 [shape = 'u32[144,128]{1,0:T(1,128)}', space=vmem, size = 0x12000, scoped, tag = 'internal scratch']
  %s0 = inlined_call_operand.vmem [shape: f32[1,32], index: 0, kind: input, shape index: {}]
  %s1 = inlined_call_operand.vmem [shape: f32[256,1], index: 1, kind: input, shape index: {}]
  %s2 = inlined_call_operand.vmem [shape: f32[256,32], index: 2, kind: output, shape index: {}]
  %s3 = sld [smem:[#allocation0]]
  $region41: #{tpu_custom_call.1} parent=0
    _
  %s5 = ssub.s32 1, %s3
  %s6 = scalar_select 0, %s5, %s3
  loop: start=0, step=1, limit=10
  $region2: #{tpu_custom_call.1} parent=0 // loop_pre_header
    _
  $region3: #{tpu_custom_call.1} parent=0 // loop_header
    %s8 = sphi 0, %s12
    %p9 = scmp.ge.s32.totalorder %s8, 10
    %s16 = sphi 0, %s16
    %s18 = sphi 0, %s16
    %s19 = sphi 0, %s18
    %s33 = sphi 0, %s19
    %s39 = sphi 0, %s41
    %s42 = sphi 0, %s39
    %s43 = sphi 0, %s42
    %s59 = sphi 0, %s43
    %s65 = sphi 0, %s67
    %s68 = sphi 0, %s65
    %s69 = sphi 0, %s68
    %s85 = sphi 0, %s69
  $region4: #{tpu_custom_call.1} parent=0 // loop_header_branch
    %11 = sbr.rel (%p9) target = $region8
  $region5: #{tpu_custom_call.1} parent=0 // loop_body
    %s13 = ssub.s32 %s8, 1
    %s14 = ssub.s32 %s8, 2
    %s15 = sadd.s32 %s8, 1
    %s17 = sadd.s32 %s16, 1
    %p20 = scmp.eq.s32.totalorder %s8, 7
    %p21 = scmp.ne.s32.totalorder %s16, %s18
    %p22 = scmp.eq.s32.totalorder %s8, 0
    %p23 = por %p21, %p22
    %p24 = scmp.ne.s32.totalorder %s16, %s18
    %p25 = scmp.eq.s32.totalorder %s13, 7
    %p26 = por %p24, %p25
    %p27 = scmp.ne.s32.totalorder %s18, %s19
    %p28 = scmp.eq.s32.totalorder %s13, 0
    %p29 = por %p27, %p28
    %p30 = scmp.ne.s32.totalorder %s18, %s19
    %p31 = scmp.eq.s32.totalorder %s14, 7
    %p32 = por %p30, %p31
    %p34 = scmp.ne.s32.totalorder %s19, %s33
    %p35 = scmp.eq.s32.totalorder %s14, 0
    %p36 = por %p34, %p35
    %s37 = ssub.s32 %s8, %s15
    %p38 = scmp.eq.s32.totalorder %s37, 0
    %s40 = sadd.s32 %s39, 1
    %s41 = scalar_select %p38, %s39, %s40
    %p44 = pneg %p38
    %p45 = scmp.eq.s32.totalorder %s8, 7
    %p46 = por %p44, %p45
    %p47 = scmp.ne.s32.totalorder %s39, %s42
    %p48 = scmp.eq.s32.totalorder %s8, 0
    %p49 = por %p47, %p48
    %p50 = scmp.ne.s32.totalorder %s39, %s42
    %p51 = scmp.eq.s32.totalorder %s13, 7
    %p52 = por %p50, %p51
    %p53 = scmp.ne.s32.totalorder %s42, %s43
    %p54 = scmp.eq.s32.totalorder %s13, 0
    %p55 = por %p53, %p54
    %p56 = scmp.ne.s32.totalorder %s42, %s43
    %p57 = scmp.eq.s32.totalorder %s14, 7
    %p58 = por %p56, %p57
    %p60 = scmp.ne.s32.totalorder %s43, %s59
    %p61 = scmp.eq.s32.totalorder %s14, 0
    %p62 = por %p60, %p61
    %s63 = ssub.s32 %s8, %s15
    %p64 = scmp.eq.s32.totalorder %s63, 0
    %s66 = sadd.s32 %s65, 1
    %s67 = scalar_select %p64, %s65, %s66
    %p70 = pneg %p64
    %p71 = scmp.eq.s32.totalorder %s8, 7
    %p72 = por %p70, %p71
    %p73 = scmp.ne.s32.totalorder %s65, %s68
    %p74 = scmp.eq.s32.totalorder %s8, 0
    %p75 = por %p73, %p74
    %p76 = scmp.ne.s32.totalorder %s65, %s68
    %p77 = scmp.eq.s32.totalorder %s13, 7
    %p78 = por %p76, %p77
    %p79 = scmp.ne.s32.totalorder %s68, %s69
    %p80 = scmp.eq.s32.totalorder %s13, 0
    %p81 = por %p79, %p80
    %p82 = scmp.ne.s32.totalorder %s68, %s69
    %p83 = scmp.eq.s32.totalorder %s14, 7
    %p84 = por %p82, %p83
    %p86 = scmp.ne.s32.totalorder %s69, %s85
    %p87 = scmp.eq.s32.totalorder %s14, 0
    %p88 = por %p86, %p87
    %p89 = scmp.le.s32.totalorder 1, %s8
    %p90 = scmp.lt.s32.totalorder %s8, 9
    %p91 = pnand %p89, %p90
    %p92 = pneg %p91
    // Predicated region
    $region9: #{tpu_custom_call.1} parent=5 // pred_check
      _
    $region10: #{tpu_custom_call.1} parent=5 // pred_check_branch
      %94 = sbr.rel (%p91) target = $region12
    $region11: #{tpu_custom_call.1} parent=5 // pred_region
      %s95 = ssub.s32 %s8, 1
      // Predicated region
      $region13: #{tpu_custom_call.1} parent=11 // pred_check
        %p96 = pneg %p29
      $region14: #{tpu_custom_call.1} parent=11 // pred_check_branch
        %98 = sbr.rel (%p96) target = $region16
      $region15: #{tpu_custom_call.1} parent=11 // pred_region
        _
      $region16: #{tpu_custom_call.1} parent=11 // pred_fallthru
        _
    $region12: #{tpu_custom_call.1} parent=5 // pred_fallthru
      _
    %p99 = scmp.lt.s32.totalorder %s8, 8
    // Predicated region
    $region17: #{tpu_custom_call.1} parent=5 // pred_check
      %p100 = pneg %p99
    $region18: #{tpu_custom_call.1} parent=5 // pred_check_branch
      %102 = sbr.rel (%p100) target = $region20
    $region19: #{tpu_custom_call.1} parent=5 // pred_region
      // Predicated region
      $region21: #{tpu_custom_call.1} parent=19 // pred_check
        %p103 = pneg %p49
      $region22: #{tpu_custom_call.1} parent=19 // pred_check_branch
        %105 = sbr.rel (%p103) target = $region24
      $region23: #{tpu_custom_call.1} parent=19 // pred_region
        %s106 = smul.u32 4, %s8
        %p107 = scmp.lt.s32.totalorder %s106, 31
        %s108 = scalar_select %p107, %s106, 31
        %s109 = smul.addr %s108, 8
        %s110 = scalar_lea.vmem %s1, %s109
        %s111 = smul.u32 4, %s8
      $region24: #{tpu_custom_call.1} parent=19 // pred_fallthru
        _
    $region20: #{tpu_custom_call.1} parent=5 // pred_fallthru
      _
    %p112 = scmp.le.s32.totalorder 1, %s8
    %p113 = scmp.lt.s32.totalorder %s8, 9
    %p114 = pnand %p112, %p113
    %p115 = pneg %p114
    // Predicated region
    $region25: #{tpu_custom_call.1} parent=5 // pred_check
      _
    $region26: #{tpu_custom_call.1} parent=5 // pred_check_branch
      %117 = sbr.rel (%p114) target = $region28
    $region27: #{tpu_custom_call.1} parent=5 // pred_region
      %s118 = ssub.s32 %s8, 1
      %p119 = pneg %p29
      %p120 = pneg %p26
      %s121 = smul.u32 4, %s13
      %p122 = scmp.lt.s32.totalorder %s121, 31
      %s123 = scalar_select %p122, %s121, 31
      %s124 = smul.addr %s123, 8
      %s125 = scalar_lea.vmem %s1, %s124
      %p126 = pneg %p55
      %p127 = pneg %p52
      %p128 = pneg %p81
      %p129 = pneg %p78
      %s130 = smul.u32 4, %s13
      %p131 = scmp.lt.s32.totalorder %s130, 31
      %s132 = scalar_select %p131, %s130, 31
      %s133 = smul.addr %s132, 8
      %s134 = scalar_lea.vmem %s2, %s133
      %s135 = smul.u32 4, %s13
      %p136 = scmp.lt.s32.totalorder %s135, 31
      %s137 = scalar_select %p136, %s135, 31
      %s138 = smul.addr %s137, 8
      %s139 = scalar_lea.vmem %s1, %s138
      %s140 = smul.u32 4, %s13
      %s141 = smul.u32 4, %s13
      %p142 = scmp.lt.s32.totalorder %s141, 31
      %s143 = scalar_select %p142, %s141, 31
      %s144 = smul.addr %s143, 8
      %s145 = scalar_lea.vmem %s2, %s144
      %s146 = smul.u32 4, %s13
      %v147 = vld [vmem:[%s139] sm:$0xff]
      %v148 = vld [vmem:[%s139 + $0x8] sm:$0xff]
      %v149 = vld [vmem:[%s139 + $0x10] sm:$0xff]
      %v150 = vld [vmem:[%s139 + $0x18] sm:$0xff]
      %v151 = vld [vmem:[%s0] sm:$0x1]
      %153 = vset.pattern.permute.xlu0 0
      %154 = vperm.xlu0 %153, %v147
      %v155 = vpop.permute.xlu0 %154
      %158 = vset.pattern.permute.xlu0 0
      %159 = vperm.xlu0 %158, %v148
      %v160 = vpop.permute.xlu0 %159
      %163 = vset.pattern.permute.xlu0 0
      %164 = vperm.xlu0 %163, %v149
      %v165 = vpop.permute.xlu0 %164
      %168 = vset.pattern.permute.xlu0 0
      %169 = vperm.xlu0 %168, %v150
      %v170 = vpop.permute.xlu0 %169
      %v173 = vlaneseq
      %v174 = vshrl.u32 %v173, 7
      %v175 = vsub.s32 0, %v174
      %v176 = vrot.slane %v151, %v175
      %v178 = vmul.f32 %v155, %v176
      %v179 = vmul.f32 %v160, %v176
      %v180 = vmul.f32 %v165, %v176
      %v181 = vmul.f32 %v170, %v176
      %v182 = vsub.f32 0.0, %v178
      %v183 = vsub.f32 0.0, %v179
      %v184 = vsub.f32 0.0, %v180
      %v185 = vsub.f32 0.0, %v181
      %v186 = vmul.f32 %v182, 1.442695
      %v187 = vpow.pop %v186
      %v188 = vmul.f32 %v183, 1.442695
      %v189 = vpow.pop %v188
      %v190 = vmul.f32 %v184, 1.442695
      %v191 = vpow.pop %v190
      %v192 = vmul.f32 %v185, 1.442695
      %v193 = vpow.pop %v192
      %vm194 = vcmask 261120
      %195 = vst.msk [vmem:[%s145] sm:$0xff] %vm194, %v187
      %196 = vst.msk [vmem:[%s145 + $0x8] sm:$0xff] %vm194, %v189
      %197 = vst.msk [vmem:[%s145 + $0x10] sm:$0xff] %vm194, %v191
      %198 = vst.msk [vmem:[%s145 + $0x18] sm:$0xff] %vm194, %v193
      %s199 = smul.u32 4, %s13
      %p200 = scmp.lt.s32.totalorder %s199, 31
      %s201 = scalar_select %p200, %s199, 31
      %s202 = smul.addr %s201, 8
      %s203 = scalar_lea.vmem %s2, %s202
      // Predicated region
      $region29: #{tpu_custom_call.1} parent=27 // pred_check
        %p204 = pneg %p78
      $region30: #{tpu_custom_call.1} parent=27 // pred_check_branch
        %206 = sbr.rel (%p204) target = $region32
      $region31: #{tpu_custom_call.1} parent=27 // pred_region
        %s207 = smul.u32 4, %s13
      $region32: #{tpu_custom_call.1} parent=27 // pred_fallthru
        _
    $region28: #{tpu_custom_call.1} parent=5 // pred_fallthru
      _
    %p208 = scmp.le.s32.totalorder 2, %s8
    // Predicated region
    $region33: #{tpu_custom_call.1} parent=5 // pred_check
      %p209 = pneg %p208
    $region34: #{tpu_custom_call.1} parent=5 // pred_check_branch
      %211 = sbr.rel (%p209) target = $region36
    $region35: #{tpu_custom_call.1} parent=5 // pred_region
      %s212 = ssub.s32 %s8, 2
      // Predicated region
      $region37: #{tpu_custom_call.1} parent=35 // pred_check
        %p213 = pneg %p84
      $region38: #{tpu_custom_call.1} parent=35 // pred_check_branch
        %215 = sbr.rel (%p213) target = $region40
      $region39: #{tpu_custom_call.1} parent=35 // pred_region
        %s216 = smul.u32 4, %s14
        %p217 = scmp.lt.s32.totalorder %s216, 31
        %s218 = scalar_select %p217, %s216, 31
        %s219 = smul.addr %s218, 8
        %s220 = scalar_lea.vmem %s2, %s219
      $region40: #{tpu_custom_call.1} parent=35 // pred_fallthru
        _
    $region36: #{tpu_custom_call.1} parent=5 // pred_fallthru
      _
  $region6: #{tpu_custom_call.1} parent=0 // loop_footer
    %s12 = sadd.s32 1, %s8
  $region7: #{tpu_custom_call.1} parent=0 // loop_footer_branch
    %7 = sbr.rel target = $region3
  $region8: #{tpu_custom_call.1} parent=0 // loop_exit
    _

</llo_original>
